<compile_context>
chip_gen: v7x
topology: tpu7x:2x2x1
jax: 0.10.0
libtpu: 0.0.40
codegen_flags: <defaults>
</compile_context>

<pallas_src>
import functools

import jax
import jax.numpy as jnp
from jax.experimental import pallas as pl
from jax.experimental.pallas import tpu as pltpu

_NEG_PAD = -1e30      # finite "minus infinity" used to mask ragged class tiles
_IGNORE_INDEX = -100  # PyTorch CrossEntropyLoss default


def _round_up(x, m):
    return ((x + m - 1) // m) * m


def _pick_tile_c(c, tile_c):
    """Class-tile width: full extent if it fits, else a multiple of 128,
    preferring one that divides round_up(c, 128) (ragged mask compiles out
    for 128-aligned vocabs like 32000 / 128256)."""
    tile_c = max(128, (tile_c // 128) * 128)
    c128 = _round_up(c, 128)
    if c128 <= tile_c:
        return c                          # single full-extent class tile
    t = tile_c
    while t >= max(128, tile_c // 2):
        if c128 % t == 0:
            return t
        t -= 128
    return tile_c


def _pick_tile_n(n, tile_n):
    """Row-tile height: multiple of 8 (or full extent); split small batches
    into two row tiles so the 'parallel' axis can use both v7x TensorCores."""
    tile_n = max(8, (tile_n // 8) * 8)
    if n > tile_n:
        return tile_n
    if n >= 16:
        return _round_up((n + 1) // 2, 8)
    return n


def _ce_kernel(logits_ref, labels_ref, loss_ref, m_sc, l_sc, corr_sc,
               *, num_classes, mask_c):
    j = pl.program_id(1)
    n_c_tiles = pl.num_programs(1)

    @pl.when(j == 0)
    def _():
        m_sc[...] = jnp.full_like(m_sc, -jnp.inf)
        l_sc[...] = jnp.zeros_like(l_sc)
        corr_sc[...] = jnp.zeros_like(corr_sc)

    x = logits_ref[...]                       # (tn, tc), native dtype
    labels = labels_ref[...]                  # (tn, 1) int32
    tn, tc = x.shape

    col = jax.lax.broadcasted_iota(jnp.int32, (tn, tc), 1)   # local column id

    if mask_c:
        # Only compiled when C % tc != 0: columns >= num_classes in the last
        # class tile hold garbage (OOB read) and must not reach max/exp/sum.
        limit = num_classes - j * tc          # scalar; >= tc for full tiles
        x = jnp.where(col < limit, x, _NEG_PAD)

    # ---- online logsumexp across class tiles (f32 accumulators) ----
    tile_max = jnp.max(x, axis=-1, keepdims=True).astype(jnp.float32)
    m_old = m_sc[...]
    m_new = jnp.maximum(m_old, tile_max)
    alpha = jnp.exp(m_old - m_new)            # (tn,1) rescale of previous sum
    p = jnp.exp(x - m_new)                    # widens to f32; one exp/element
    l_sc[...] = alpha * l_sc[...] + jnp.sum(p, axis=-1, keepdims=True)
    m_sc[...] = m_new

    # ---- correct-class logit: shifted-label compare + select (2 VPU ops) ----
    labels_local = labels - j * tc            # (tn,1); ignore_index stays < 0
    picked = jnp.where(col == labels_local, x, 0.0)
    corr_sc[...] += jnp.sum(picked, axis=-1, keepdims=True,
                            dtype=jnp.float32)

    @pl.when(j == n_c_tiles - 1)
    def _():
        valid = labels != _IGNORE_INDEX       # (tn,1) bool
        lse = m_sc[...] + jnp.log(l_sc[...])
        loss_ref[...] = jnp.where(valid, lse - corr_sc[...], 0.0)


def cross_entropy_loss(logits, labels, *, tile_n=256, tile_c=4096):
    """logits: (N, C) float (any dtype), labels: (N,) int -> scalar f32.

    Matches torch.nn.CrossEntropyLoss() (mean reduction, ignore_index=-100)
    for 2-D logits / 1-D class-index labels.
    """
    n, c = logits.shape
    labels = labels.astype(jnp.int32)

    tc = _pick_tile_c(c, tile_c)
    tn = _pick_tile_n(n, tile_n)
    mask_c = (c % tc) != 0
    grid = (pl.cdiv(n, tn), pl.cdiv(c, tc))

    labels2d = labels.reshape(n, 1)
    kernel = functools.partial(_ce_kernel, num_classes=c, mask_c=mask_c)

    per_row_loss = pl.pallas_call(
        kernel,
        out_shape=jax.ShapeDtypeStruct((n, 1), jnp.float32),
        grid_spec=pltpu.PrefetchScalarGridSpec(
            num_scalar_prefetch=0,
            grid=grid,
            in_specs=[
                pl.BlockSpec((tn, tc), lambda i, j: (i, j)),   # logits tile
                pl.BlockSpec((tn, 1), lambda i, j: (i, 0)),    # labels column
            ],
            out_specs=pl.BlockSpec((tn, 1), lambda i, j: (i, 0)),  # row losses
            scratch_shapes=[pltpu.VMEM((tn, 1), jnp.float32)] * 3,  # m, l, corr
        ),
        compiler_params=pltpu.CompilerParams(
            dimension_semantics=("parallel", "arbitrary"),
            vmem_limit_bytes=48 * 1024 * 1024,
        ),
    )(logits, labels2d)

    # Final mean with ignore_index semantics (count from the real labels).
    total = jnp.sum(per_row_loss)
    count = jnp.sum((labels != _IGNORE_INDEX).astype(jnp.float32))
    return total / count


if __name__ == "__main__":
    key = jax.random.PRNGKey(0)
    k1, k2 = jax.random.split(key)

    # 1) Small shapes consistent with the module: batch 8, 32 classes, f32.
    N, C = 8, 32
    logits = jax.random.normal(k1, (N, C), dtype=jnp.float32)
    labels = jax.random.randint(k2, (N,), 0, C, dtype=jnp.int32)

    loss = cross_entropy_loss(logits, labels)
    jax.block_until_ready(loss)
    ref = jnp.mean(
        jax.nn.logsumexp(logits, axis=-1)
        - jnp.take_along_axis(logits, labels[:, None], axis=-1)[:, 0]
    )
    assert jnp.allclose(loss, ref, atol=1e-5, rtol=1e-5), (loss, ref)

    # 2) ignore_index=-100 (PyTorch default).
    labels_ig = labels.at[3].set(_IGNORE_INDEX)
    loss_ig = cross_entropy_loss(logits, labels_ig)
    jax.block_until_ready(loss_ig)
    per = jax.nn.logsumexp(logits, axis=-1) - jnp.take_along_axis(
        logits, jnp.clip(labels_ig, 0, C - 1)[:, None], axis=-1
    )[:, 0]
    mask = (labels_ig != _IGNORE_INDEX).astype(jnp.float32)
    ref_ig = jnp.sum(per * mask) / jnp.sum(mask)
    assert jnp.allclose(loss_ig, ref_ig, atol=1e-5, rtol=1e-5), (loss_ig, ref_ig)

    # 3) Multi-tile bf16 path: ragged row tile (272 % 256 != 0), 3 class tiles,
    #    online LSE across C, native bf16 loads — no wrapper padding anywhere.
    k3, k4 = jax.random.split(k2)
    N2, C2 = 272, 384
    logits2 = jax.random.normal(k3, (N2, C2), dtype=jnp.bfloat16)
    labels2 = jax.random.randint(k4, (N2,), 0, C2, dtype=jnp.int32)
    loss2 = cross_entropy_loss(logits2, labels2, tile_n=256, tile_c=128)
    jax.block_until_ready(loss2)
    logits2_f32 = logits2.astype(jnp.float32)
    ref2 = jnp.mean(
        jax.nn.logsumexp(logits2_f32, axis=-1)
        - jnp.take_along_axis(logits2_f32, labels2[:, None], axis=-1)[:, 0]
    )
    assert jnp.allclose(loss2, ref2, atol=1e-4, rtol=1e-4), (loss2, ref2)

    # 4) Ragged class tile (200 % 128 != 0) exercises the in-kernel C mask,
    #    plus the small-batch two-row-tile split (64 rows -> 2 x 32).
    k5, k6 = jax.random.split(k4)
    N3, C3 = 64, 200
    logits3 = jax.random.normal(k5, (N3, C3), dtype=jnp.float32)
    labels3 = jax.random.randint(k6, (N3,), 0, C3, dtype=jnp.int32)
    loss3 = cross_entropy_loss(logits3, labels3, tile_n=256, tile_c=128)
    jax.block_until_ready(loss3)
    ref3 = jnp.mean(
        jax.nn.logsumexp(logits3, axis=-1)
        - jnp.take_along_axis(logits3, labels3[:, None], axis=-1)[:, 0]
    )
    assert jnp.allclose(loss3, ref3, atol=1e-5, rtol=1e-5), (loss3, ref3)

    print("KERNEL_OK")
</pallas_src>

<mosaic_0001>
module attributes {stable_mosaic.version = 11 : i64} {
  func.func @_ce_kernel(%arg0: i32, %arg1: i32, %arg2: memref<8x32xf32, #tpu.memory_space<vmem>>, %arg3: memref<8x1xi32, #tpu.memory_space<vmem>>, %arg4: memref<8x1xf32, #tpu.memory_space<vmem>>, %arg5: memref<8x1xf32, #tpu.memory_space<vmem>>, %arg6: memref<8x1xf32, #tpu.memory_space<vmem>>, %arg7: memref<8x1xf32, #tpu.memory_space<vmem>>) attributes {dimension_semantics = [#tpu.dimension_semantics<parallel>, #tpu.dimension_semantics<arbitrary>], iteration_bounds = array<i64: 1, 1>, scalar_prefetch = 0 : i64, scratch_operands = 3 : i64, tpu.core_type = #tpu.core_type<tc>, window_params = [{transform_indices = @transform_0, window_bounds = array<i64: 8, 32>}, {transform_indices = @transform_1, window_bounds = array<i64: 8, 1>}, {transform_indices = @transform_2, window_bounds = array<i64: 8, 1>}]} {
    %c0_i32 = arith.constant 0 : i32
    %0 = arith.cmpi eq, %arg1, %c0_i32 : i32
    %1 = arith.extui %0 : i1 to i32
    %c0_i32_0 = arith.constant 0 : i32
    %2 = arith.cmpi ne, %1, %c0_i32_0 : i32
    scf.if %2 {
      %cst_21 = arith.constant 0xFF800000 : f32
      %37 = vector.broadcast %cst_21 : f32 to vector<8x1xf32>
      %c0_22 = arith.constant 0 : index
      %c0_23 = arith.constant 0 : index
      %38 = vector.load %arg5[%c0_22, %c0_23] : memref<8x1xf32, #tpu.memory_space<vmem>>, vector<8x1xf32>
      tpu.vector_store %arg5[%c0_22, %c0_23], %37 {strides = array<i32>} : memref<8x1xf32, #tpu.memory_space<vmem>>, vector<8x1xf32>,
      %cst_24 = arith.constant 0.000000e+00 : f32
      %39 = vector.broadcast %cst_24 : f32 to vector<8x1xf32>
      %c0_25 = arith.constant 0 : index
      %c0_26 = arith.constant 0 : index
      %40 = vector.load %arg6[%c0_25, %c0_26] : memref<8x1xf32, #tpu.memory_space<vmem>>, vector<8x1xf32>
      tpu.vector_store %arg6[%c0_25, %c0_26], %39 {strides = array<i32>} : memref<8x1xf32, #tpu.memory_space<vmem>>, vector<8x1xf32>,
      %cst_27 = arith.constant 0.000000e+00 : f32
      %41 = vector.broadcast %cst_27 : f32 to vector<8x1xf32>
      %c0_28 = arith.constant 0 : index
      %c0_29 = arith.constant 0 : index
      %42 = vector.load %arg7[%c0_28, %c0_29] : memref<8x1xf32, #tpu.memory_space<vmem>>, vector<8x1xf32>
      tpu.vector_store %arg7[%c0_28, %c0_29], %41 {strides = array<i32>} : memref<8x1xf32, #tpu.memory_space<vmem>>, vector<8x1xf32>,
    } else {
    }
    %c0 = arith.constant 0 : index
    %c0_1 = arith.constant 0 : index
    %3 = vector.load %arg2[%c0, %c0_1] : memref<8x32xf32, #tpu.memory_space<vmem>>, vector<8x32xf32>
    %c0_2 = arith.constant 0 : index
    %c0_3 = arith.constant 0 : index
    %4 = vector.load %arg3[%c0_2, %c0_3] : memref<8x1xi32, #tpu.memory_space<vmem>>, vector<8x1xi32>
    %5 = tpu.iota {dimensions = array<i32: 1>} : vector<8x32xi32>
    %cst = arith.constant dense<0xFF800000> : vector<8xf32>
    %6 = vector.multi_reduction <maximumf>, %3, %cst [1] : vector<8x32xf32> to vector<8xf32>
    %7 = vector.shape_cast %6 : vector<8xf32> to vector<8x1xf32>
    %c0_4 = arith.constant 0 : index
    %c0_5 = arith.constant 0 : index
    %8 = vector.load %arg5[%c0_4, %c0_5] : memref<8x1xf32, #tpu.memory_space<vmem>>, vector<8x1xf32>
    %9 = arith.maximumf %8, %7 : vector<8x1xf32>
    %10 = arith.subf %8, %9 : vector<8x1xf32>
    %11 = math.exp %10 : vector<8x1xf32>
    %12 = vector.broadcast %9 : vector<8x1xf32> to vector<8x32xf32>
    %13 = arith.subf %3, %12 : vector<8x32xf32>
    %14 = math.exp %13 : vector<8x32xf32>
    %c0_6 = arith.constant 0 : index
    %c0_7 = arith.constant 0 : index
    %15 = vector.load %arg6[%c0_6, %c0_7] : memref<8x1xf32, #tpu.memory_space<vmem>>, vector<8x1xf32>
    %16 = arith.mulf %11, %15 : vector<8x1xf32>
    %cst_8 = arith.constant dense<0.000000e+00> : vector<8xf32>
    %17 = vector.multi_reduction <add>, %14, %cst_8 [1] : vector<8x32xf32> to vector<8xf32>
    %18 = vector.shape_cast %17 : vector<8xf32> to vector<8x1xf32>
    %19 = arith.addf %16, %18 : vector<8x1xf32>
    %c0_9 = arith.constant 0 : index
    %c0_10 = arith.constant 0 : index
    %20 = vector.load %arg6[%c0_9, %c0_10] : memref<8x1xf32, #tpu.memory_space<vmem>>, vector<8x1xf32>
    tpu.vector_store %arg6[%c0_9, %c0_10], %19 {strides = array<i32>} : memref<8x1xf32, #tpu.memory_space<vmem>>, vector<8x1xf32>,
    %c0_11 = arith.constant 0 : index
    %c0_12 = arith.constant 0 : index
    %21 = vector.load %arg5[%c0_11, %c0_12] : memref<8x1xf32, #tpu.memory_space<vmem>>, vector<8x1xf32>
    tpu.vector_store %arg5[%c0_11, %c0_12], %9 {strides = array<i32>} : memref<8x1xf32, #tpu.memory_space<vmem>>, vector<8x1xf32>,
    %c32_i32 = arith.constant 32 : i32
    %22 = arith.muli %arg1, %c32_i32 : i32
    %23 = vector.broadcast %22 : i32 to vector<8x1xi32>
    %24 = arith.subi %4, %23 : vector<8x1xi32>
    %25 = vector.broadcast %24 : vector<8x1xi32> to vector<8x32xi32>
    %26 = arith.cmpi eq, %5, %25 : vector<8x32xi32>
    %cst_13 = arith.constant 0.000000e+00 : f32
    %27 = vector.broadcast %cst_13 : f32 to vector<8x32xf32>
    %28 = arith.select %26, %3, %27 : vector<8x32xi1>, vector<8x32xf32>
    %c0_14 = arith.constant 0 : index
    %c0_15 = arith.constant 0 : index
    %29 = vector.load %arg7[%c0_14, %c0_15] : memref<8x1xf32, #tpu.memory_space<vmem>>, vector<8x1xf32>
    %cst_16 = arith.constant dense<0.000000e+00> : vector<8xf32>
    %30 = vector.multi_reduction <add>, %28, %cst_16 [1] : vector<8x32xf32> to vector<8xf32>
    %31 = vector.shape_cast %30 : vector<8xf32> to vector<8x1xf32>
    %32 = arith.addf %29, %31 : vector<8x1xf32>
    %c0_17 = arith.constant 0 : index
    %c0_18 = arith.constant 0 : index
    %33 = vector.load %arg7[%c0_17, %c0_18] : memref<8x1xf32, #tpu.memory_space<vmem>>, vector<8x1xf32>
    tpu.vector_store %arg7[%c0_17, %c0_18], %32 {strides = array<i32>} : memref<8x1xf32, #tpu.memory_space<vmem>>, vector<8x1xf32>,
    %c0_i32_19 = arith.constant 0 : i32
    %34 = arith.cmpi eq, %arg1, %c0_i32_19 : i32
    %35 = arith.extui %34 : i1 to i32
    %c0_i32_20 = arith.constant 0 : i32
    %36 = arith.cmpi ne, %35, %c0_i32_20 : i32
    scf.if %36 {
      %c-100_i32 = arith.constant -100 : i32
      %37 = vector.broadcast %c-100_i32 : i32 to vector<8x1xi32>
      %38 = arith.cmpi ne, %4, %37 : vector<8x1xi32>
      %c0_21 = arith.constant 0 : index
      %c0_22 = arith.constant 0 : index
      %39 = vector.load %arg5[%c0_21, %c0_22] : memref<8x1xf32, #tpu.memory_space<vmem>>, vector<8x1xf32>
      %c0_23 = arith.constant 0 : index
      %c0_24 = arith.constant 0 : index
      %40 = vector.load %arg6[%c0_23, %c0_24] : memref<8x1xf32, #tpu.memory_space<vmem>>, vector<8x1xf32>
      %41 = math.log %40 : vector<8x1xf32>
      %42 = arith.addf %39, %41 : vector<8x1xf32>
      %c0_25 = arith.constant 0 : index
      %c0_26 = arith.constant 0 : index
      %43 = vector.load %arg7[%c0_25, %c0_26] : memref<8x1xf32, #tpu.memory_space<vmem>>, vector<8x1xf32>
      %44 = arith.subf %42, %43 : vector<8x1xf32>
      %cst_27 = arith.constant 0.000000e+00 : f32
      %45 = vector.broadcast %cst_27 : f32 to vector<8x1xf32>
      %46 = arith.select %38, %44, %45 : vector<8x1xi1>, vector<8x1xf32>
      %c0_28 = arith.constant 0 : index
      %c0_29 = arith.constant 0 : index
      %47 = vector.load %arg4[%c0_28, %c0_29] : memref<8x1xf32, #tpu.memory_space<vmem>>, vector<8x1xf32>
      tpu.vector_store %arg4[%c0_28, %c0_29], %46 {strides = array<i32>} : memref<8x1xf32, #tpu.memory_space<vmem>>, vector<8x1xf32>,
    } else {
    }
    return
  }
  func.func @transform_0(%arg0: i32, %arg1: i32) -> (i32, i32) {
    %c0_i32 = arith.constant 0 : i32
    return %arg0, %arg1 : i32, i32
  }
  func.func @transform_1(%arg0: i32, %arg1: i32) -> (i32, i32) {
    %c0_i32 = arith.constant 0 : i32
    %c0_i32_0 = arith.constant 0 : i32
    return %arg0, %c0_i32 : i32, i32
  }
  func.func @transform_2(%arg0: i32, %arg1: i32) -> (i32, i32) {
    %c0_i32 = arith.constant 0 : i32
    %c0_i32_0 = arith.constant 0 : i32
    return %arg0, %c0_i32 : i32, i32
  }
}

</mosaic_0001>

<llo_original>
// kernel: tpu_custom_call.1
$region0: #{tpu_custom_call.1}
  #allocation0 [shape = 'u32[]', space=smem, size = 0x4, offset = 0x4, fixed_abs, tag = 'smem constant byte address 0x4 - core index']
  #allocation1 [shape = 'u32[144,128]{1,0:T(1,128)}', space=vmem, size = 0x12000, scoped, tag = 'internal scratch']
  #allocation2 [shape = 'f32[8,1]{1,0:T(8,128)}', space=vmem, size = 0x1000, scoped, tag = 'scratch operand']
  #allocation3 [shape = 'f32[8,1]{1,0:T(8,128)}', space=vmem, size = 0x1000, scoped, tag = 'scratch operand']
  #allocation4 [shape = 'f32[8,1]{1,0:T(8,128)}', space=vmem, size = 0x1000, scoped, tag = 'scratch operand']
  %s0 = inlined_call_operand.vmem [shape: f32[8,32], index: 0, kind: input, shape index: {}]
  %s1 = inlined_call_operand.vmem [shape: s32[8,1], index: 1, kind: input, shape index: {}]
  %s2 = inlined_call_operand.vmem [shape: f32[8,1], index: 2, kind: output, shape index: {}]
  %s3 = sld [smem:[#allocation0]]
  $region26: #{tpu_custom_call.1} parent=0
    _
  %s5 = ssub.s32 1, %s3
  %s6 = scalar_select 0, %s5, %s3
  // Predicated region
  $region2: #{tpu_custom_call.1} parent=0 // pred_check
    _
  $region3: #{tpu_custom_call.1} parent=0 // pred_check_branch
    %8 = sbr.rel (0) target = $region5
  $region4: #{tpu_custom_call.1} parent=0 // pred_region
    _
  $region5: #{tpu_custom_call.1} parent=0 // pred_fallthru
    _
  // Predicated region
  $region6: #{tpu_custom_call.1} parent=0 // pred_check
    _
  $region7: #{tpu_custom_call.1} parent=0 // pred_check_branch
    %10 = sbr.rel (0) target = $region9
  $region8: #{tpu_custom_call.1} parent=0 // pred_region
    _
  $region9: #{tpu_custom_call.1} parent=0 // pred_fallthru
    _
  %p11 = scmp.eq.s32.totalorder 0, 0
  // Predicated region
  $region10: #{tpu_custom_call.1} parent=0 // pred_check
    %p12 = pneg %p11
  $region11: #{tpu_custom_call.1} parent=0 // pred_check_branch
    %14 = sbr.rel (%p12) target = $region13
  $region12: #{tpu_custom_call.1} parent=0 // pred_region
    %vm15 = vcmask 7168
    %16 = vst.msk [vmem:[#allocation2] sm:$0xff] %vm15, -inf
    %17 = vst.msk [vmem:[#allocation3] sm:$0xff] %vm15, 0.0
    %18 = vst.msk [vmem:[#allocation4] sm:$0xff] %vm15, 0.0
  $region13: #{tpu_custom_call.1} parent=0 // pred_fallthru
    _
  %v19 = vld [vmem:[%s0] sm:$0xff]
  %v20 = vld [vmem:[%s1] sm:$0xff]
  %v21 = vlaneseq
  %v22 = vand.u32 %v21, 127
  %vm23 = vcmask 261120
  %v24 = vsel %vm23, %v19, -inf
  %25 = vmax.xlane.f32.xlu0 %v24
  %v26 = vpop.xlane.xlu0 %25
  %v27 = vld [vmem:[#allocation2] sm:$0xff]
  %v28 = vmax.f32 %v27, %v26
  %v29 = vsub.f32 %v27, %v28
  %v30 = vmul.f32 %v29, 1.442695
  %v31 = vpow.pop %v30
  %33 = vset.pattern.permute.xlu0 0
  %34 = vperm.xlu0 %33, %v28
  %v35 = vpop.permute.xlu0 %34
  %v37 = vsub.f32 %v19, %v35
  %v38 = vmul.f32 %v37, 1.442695
  %v39 = vpow.pop %v38
  %v40 = vld [vmem:[#allocation3] sm:$0xff]
  %v41 = vmul.f32 %v31, %v40
  %v42 = vsel %vm23, %v39, 0.0
  %43 = vadd.xlane.f32.xlu0 %v42
  %v44 = vpop.xlane.xlu0 %43
  %v45 = vadd.f32 %v41, %v44
  %vm46 = vcmask 7168
  %47 = vst.msk [vmem:[#allocation3] sm:$0xff] %vm46, %v45
  %48 = vst.msk [vmem:[#allocation2] sm:$0xff] %vm46, %v28
  %s49 = smul.u32 0, 32
  %v50 = vstv %s49
  %v51 = vsub.s32 %v20, %v50
  %52 = vset.pattern.permute.xlu0 0
  %53 = vperm.xlu0 %52, %v51
  %v54 = vpop.permute.xlu0 %53
  %vm55 = vcmp.eq.s32.totalorder %v22, %v54
  %v56 = vsel %vm55, %v19, 0.0
  %v57 = vld [vmem:[#allocation4] sm:$0xff]
  %v58 = vsel %vm23, %v56, 0.0
  %59 = vadd.xlane.f32.xlu0 %v58
  %v60 = vpop.xlane.xlu0 %59
  %v61 = vadd.f32 %v57, %v60
  %62 = vst.msk [vmem:[#allocation4] sm:$0xff] %vm46, %v61
  // Predicated region
  $region14: #{tpu_custom_call.1} parent=0 // pred_check
    %p63 = pneg %p11
  $region15: #{tpu_custom_call.1} parent=0 // pred_check_branch
    %65 = sbr.rel (%p63) target = $region17
  $region16: #{tpu_custom_call.1} parent=0 // pred_region
    %vm66 = vcmp.ne.s32.totalorder %v20, 4294967196
    %v67 = vld [vmem:[#allocation2] sm:$0xff]
    %v68 = vld [vmem:[#allocation3] sm:$0xff]
    %v69 = vlog2.pop %v68
    %v70 = vmul.f32 %v69, 0.6931472
    %v71 = vadd.f32 %v67, %v70
    %v72 = vld [vmem:[#allocation4] sm:$0xff]
    %v73 = vsub.f32 %v71, %v72
    %v74 = vsel %vm66, %v73, 0.0
    %75 = vst.msk [vmem:[%s2] sm:$0xff] %vm46, %v74
  $region17: #{tpu_custom_call.1} parent=0 // pred_fallthru
    _
  // Predicated region
  $region18: #{tpu_custom_call.1} parent=0 // pred_check
    _
  $region19: #{tpu_custom_call.1} parent=0 // pred_check_branch
    %77 = sbr.rel (0) target = $region21
  $region20: #{tpu_custom_call.1} parent=0 // pred_region
    _
  $region21: #{tpu_custom_call.1} parent=0 // pred_fallthru
    _
  // Predicated region
  $region22: #{tpu_custom_call.1} parent=0 // pred_check
    _
  $region23: #{tpu_custom_call.1} parent=0 // pred_check_branch
    %79 = sbr.rel (0) target = $region25
  $region24: #{tpu_custom_call.1} parent=0 // pred_region
    _
  $region25: #{tpu_custom_call.1} parent=0 // pred_fallthru
    _

</llo_original>
